<compile_context>
chip_gen: v5e
topology: v5e:2x2
jax: 0.10.0
libtpu: 0.0.40
codegen_flags: <defaults>
</compile_context>

<pallas_src>
import jax
import jax.numpy as jnp
from jax.experimental import pallas as pl
from jax.experimental.pallas import tpu as pltpu

EPS = 1e-5


def resblock_forward(x, w1, b1, g1, be1, w2, b2, g2, be2):
    """x: (N,H,W,C) NHWC; w*: (3,3,C,C) HWIO; b*/g*/be*: (C,) per-channel vectors."""
    N, H, W, C = x.shape
    NHW = N * H * W
    f32 = jnp.float32
    taps = [(dh, dw) for dh in (-1, 0, 1) for dw in (-1, 0, 1)]   # (kh, kw) row-major

    # ---------------- wrapper-side layout plumbing (XLA) ----------------
    # channel-first, flattened activations: lane-dense (C, NHW)
    x_cf = x.astype(f32).transpose(3, 0, 1, 2).reshape(C, NHW)
    # HWIO -> (C_out, 9*C_in); columns ordered (kh, kw, c_in) to match the patch-row order
    w1t = w1.astype(f32).transpose(3, 0, 1, 2).reshape(C, 9 * C)
    w2t = w2.astype(f32).transpose(3, 0, 1, 2).reshape(C, 9 * C)
    col = lambda v: v.astype(f32).reshape(C, 1)

    # per-tap validity mask: zero where the 3x3 window would read the zero-padding halo
    pos = jnp.arange(NHW)
    hh = (pos // W) % H
    ww = pos % W
    mask_rows = []
    for dh, dw in taps:
        ok = (hh + dh >= 0) & (hh + dh < H) & (ww + dw >= 0) & (ww + dw < W)
        mask_rows.append(ok)
    mask36 = jnp.repeat(jnp.stack(mask_rows, axis=0).astype(f32), C, axis=0)  # (9C, NHW)

    # ---------------- the fused kernel ----------------
    def kernel(xcf_ref, w1t_ref, b1_ref, g1_ref, be1_ref,
               w2t_ref, b2_ref, g2_ref, be2_ref, mask_ref,
               out_ref, patch_ref):
        mask = mask_ref[...]                      # hoisted; shared by both convs

        def conv3x3(act, wmat, bias):
            # act: (C, NHW). Assemble the (9C, NHW) im2col patch matrix in a small VMEM
            # scratch (shifted register slices; only the tiny uncovered strips are zeroed),
            # mask the halo taps, then do a single MXU matmul with K = 9*C.
            for t, (dh, dw) in enumerate(taps):
                off = dh * W + dw
                r0 = t * C
                if off > 0:
                    patch_ref[r0:r0 + C, 0:NHW - off] = act[:, off:]
                    patch_ref[r0:r0 + C, NHW - off:NHW] = jnp.zeros((C, off), f32)
                elif off < 0:
                    patch_ref[r0:r0 + C, 0:-off] = jnp.zeros((C, -off), f32)
                    patch_ref[r0:r0 + C, -off:NHW] = act[:, :off]
                else:
                    patch_ref[r0:r0 + C, :] = act
            patches = patch_ref[...] * mask
            return jnp.dot(wmat, patches, preferred_element_type=f32) + bias

        def batchnorm(y, gamma, beta):
            # training-mode BN: one-pass sum / sum-of-squares over (N,H,W) per channel,
            # fused into per-channel scale & shift (rsqrt on the EUP).
            inv_n = 1.0 / NHW
            s1 = jnp.sum(y, axis=1, keepdims=True)
            s2 = jnp.sum(y * y, axis=1, keepdims=True)
            mean = s1 * inv_n
            var = s2 * inv_n - mean * mean        # biased variance (matches torch training BN)
            scale = gamma * jax.lax.rsqrt(var + EPS)
            shift = beta - mean * scale
            return y * scale + shift

        x_cfv = xcf_ref[...]

        y1 = conv3x3(x_cfv, w1t_ref[...], b1_ref[...])
        y1 = jnp.maximum(batchnorm(y1, g1_ref[...], be1_ref[...]), 0.0)

        y2 = conv3x3(y1, w2t_ref[...], b2_ref[...])
        y2 = batchnorm(y2, g2_ref[...], be2_ref[...])

        out_ref[...] = jnp.maximum(y2 + x_cfv, 0.0).astype(out_ref.dtype)

    vmem = pl.BlockSpec(memory_space=pltpu.MemorySpace.VMEM)
    out_cf = pl.pallas_call(
        kernel,
        out_shape=jax.ShapeDtypeStruct((C, NHW), f32),
        in_specs=[vmem] * 10,
        out_specs=vmem,
        scratch_shapes=[pltpu.VMEM((9 * C, NHW), f32)],   # im2col patch matrix (~72 KB here)
        compiler_params=pltpu.CompilerParams(vmem_limit_bytes=32 * 1024 * 1024),
    )(x_cf, w1t, col(b1), col(g1), col(be1), w2t, col(b2), col(g2), col(be2), mask36)

    # back to NHWC
    return out_cf.reshape(C, N, H, W).transpose(1, 2, 3, 0).astype(x.dtype)


def _ref_forward(x, w1, b1, g1, be1, w2, b2, g2, be2):
    # pure-JAX reference (NHWC / HWIO), training-mode BatchNorm
    def conv(a, w, b):
        y = jax.lax.conv_general_dilated(
            a, w, window_strides=(1, 1), padding="SAME",
            dimension_numbers=("NHWC", "HWIO", "NHWC"))
        return y + b.reshape(1, 1, 1, -1)

    def bn(y, g, be):
        mean = jnp.mean(y, axis=(0, 1, 2))
        var = jnp.mean((y - mean) ** 2, axis=(0, 1, 2))
        return (y - mean) / jnp.sqrt(var + EPS) * g.reshape(-1) + be.reshape(-1)

    identity = x
    out = jax.nn.relu(bn(conv(x, w1, b1), g1, be1))
    out = bn(conv(out, w2, b2), g2, be2)
    return jax.nn.relu(out + identity)


if __name__ == "__main__":
    N, C, H, W = 2, 4, 16, 16  # batch=2, channels=4 (in == out, stride=1, no downsample), 16x16
    key = jax.random.PRNGKey(0)
    kx, kw1, kb1, kw2, kb2 = jax.random.split(key, 5)

    # input (NHWC)
    x = jax.random.normal(kx, (N, H, W, C), dtype=jnp.float32)

    # conv params (HWIO); PyTorch conv has bias
    w1 = jax.random.normal(kw1, (3, 3, C, C), dtype=jnp.float32) * 0.2
    b1 = jax.random.normal(kb1, (C,), dtype=jnp.float32) * 0.1
    w2 = jax.random.normal(kw2, (3, 3, C, C), dtype=jnp.float32) * 0.2
    b2 = jax.random.normal(kb2, (C,), dtype=jnp.float32) * 0.1

    # BatchNorm affine params as in the module's __init__ (weight=1, bias=0)
    g1 = jnp.ones((C,), jnp.float32)
    be1 = jnp.zeros((C,), jnp.float32)
    g2 = jnp.ones((C,), jnp.float32)
    be2 = jnp.zeros((C,), jnp.float32)

    out = resblock_forward(x, w1, b1, g1, be1, w2, b2, g2, be2)
    out = jax.block_until_ready(out)

    ref = _ref_forward(x, w1, b1, g1, be1, w2, b2, g2, be2)
    assert out.shape == (N, H, W, C)
    err = float(jnp.max(jnp.abs(out - ref)))
    assert jnp.allclose(out, ref, atol=1e-4, rtol=1e-4), err

    print("KERNEL_OK")
</pallas_src>

<mosaic_0001>
module attributes {stable_mosaic.version = 11 : i64} {
  func.func @kernel(%arg0: memref<4x512xf32, #tpu.memory_space<vmem>>, %arg1: memref<4x36xf32, #tpu.memory_space<vmem>>, %arg2: memref<4x1xf32, #tpu.memory_space<vmem>>, %arg3: memref<4x1xf32, #tpu.memory_space<vmem>>, %arg4: memref<4x1xf32, #tpu.memory_space<vmem>>, %arg5: memref<4x36xf32, #tpu.memory_space<vmem>>, %arg6: memref<4x1xf32, #tpu.memory_space<vmem>>, %arg7: memref<4x1xf32, #tpu.memory_space<vmem>>, %arg8: memref<4x1xf32, #tpu.memory_space<vmem>>, %arg9: memref<36x512xf32, #tpu.memory_space<vmem>>, %arg10: memref<4x512xf32, #tpu.memory_space<vmem>>, %arg11: memref<36x512xf32, #tpu.memory_space<vmem>>) attributes {dimension_semantics = [], scalar_prefetch = 0 : i64, scratch_operands = 1 : i64, tpu.core_type = #tpu.core_type<tc>} {
    %c0 = arith.constant 0 : index
    %c0_0 = arith.constant 0 : index
    %0 = vector.load %arg9[%c0, %c0_0] : memref<36x512xf32, #tpu.memory_space<vmem>>, vector<36x512xf32>
    %c0_1 = arith.constant 0 : index
    %c0_2 = arith.constant 0 : index
    %1 = vector.load %arg0[%c0_1, %c0_2] : memref<4x512xf32, #tpu.memory_space<vmem>>, vector<4x512xf32>
    %c0_3 = arith.constant 0 : index
    %c0_4 = arith.constant 0 : index
    %2 = vector.load %arg1[%c0_3, %c0_4] : memref<4x36xf32, #tpu.memory_space<vmem>>, vector<4x36xf32>
    %c0_5 = arith.constant 0 : index
    %c0_6 = arith.constant 0 : index
    %3 = vector.load %arg2[%c0_5, %c0_6] : memref<4x1xf32, #tpu.memory_space<vmem>>, vector<4x1xf32>
    %cst = arith.constant 0.000000e+00 : f32
    %4 = vector.broadcast %cst : f32 to vector<4x17xf32>
    %c0_7 = arith.constant 0 : index
    %c0_8 = arith.constant 0 : index
    %5 = vector.load %arg11[%c0_7, %c0_8] : memref<36x512xf32, #tpu.memory_space<vmem>>, vector<4x17xf32>
    tpu.vector_store %arg11[%c0_7, %c0_8], %4 {strides = array<i32>} : memref<36x512xf32, #tpu.memory_space<vmem>>, vector<4x17xf32>,
    %6 = vector.extract_strided_slice %1 {offsets = [0, 0], sizes = [4, 495], strides = [1, 1]} : vector<4x512xf32> to vector<4x495xf32>
    %c0_9 = arith.constant 0 : index
    %c17 = arith.constant 17 : index
    %7 = vector.load %arg11[%c0_9, %c17] : memref<36x512xf32, #tpu.memory_space<vmem>>, vector<4x495xf32>
    tpu.vector_store %arg11[%c0_9, %c17], %6 {strides = array<i32>} : memref<36x512xf32, #tpu.memory_space<vmem>>, vector<4x495xf32>,
    %cst_10 = arith.constant 0.000000e+00 : f32
    %8 = vector.broadcast %cst_10 : f32 to vector<4x16xf32>
    %c4 = arith.constant 4 : index
    %c0_11 = arith.constant 0 : index
    %9 = vector.load %arg11[%c4, %c0_11] : memref<36x512xf32, #tpu.memory_space<vmem>>, vector<4x16xf32>
    tpu.vector_store %arg11[%c4, %c0_11], %8 {strides = array<i32>} : memref<36x512xf32, #tpu.memory_space<vmem>>, vector<4x16xf32>,
    %10 = vector.extract_strided_slice %1 {offsets = [0, 0], sizes = [4, 496], strides = [1, 1]} : vector<4x512xf32> to vector<4x496xf32>
    %c4_12 = arith.constant 4 : index
    %c16 = arith.constant 16 : index
    %11 = vector.load %arg11[%c4_12, %c16] : memref<36x512xf32, #tpu.memory_space<vmem>>, vector<4x496xf32>
    tpu.vector_store %arg11[%c4_12, %c16], %10 {strides = array<i32>} : memref<36x512xf32, #tpu.memory_space<vmem>>, vector<4x496xf32>,
    %cst_13 = arith.constant 0.000000e+00 : f32
    %12 = vector.broadcast %cst_13 : f32 to vector<4x15xf32>
    %c8 = arith.constant 8 : index
    %c0_14 = arith.constant 0 : index
    %13 = vector.load %arg11[%c8, %c0_14] : memref<36x512xf32, #tpu.memory_space<vmem>>, vector<4x15xf32>
    tpu.vector_store %arg11[%c8, %c0_14], %12 {strides = array<i32>} : memref<36x512xf32, #tpu.memory_space<vmem>>, vector<4x15xf32>,
    %14 = vector.extract_strided_slice %1 {offsets = [0, 0], sizes = [4, 497], strides = [1, 1]} : vector<4x512xf32> to vector<4x497xf32>
    %c8_15 = arith.constant 8 : index
    %c15 = arith.constant 15 : index
    %15 = vector.load %arg11[%c8_15, %c15] : memref<36x512xf32, #tpu.memory_space<vmem>>, vector<4x497xf32>
    tpu.vector_store %arg11[%c8_15, %c15], %14 {strides = array<i32>} : memref<36x512xf32, #tpu.memory_space<vmem>>, vector<4x497xf32>,
    %cst_16 = arith.constant 0.000000e+00 : f32
    %16 = vector.broadcast %cst_16 : f32 to vector<4x1xf32>
    %c12 = arith.constant 12 : index
    %c0_17 = arith.constant 0 : index
    %17 = vector.load %arg11[%c12, %c0_17] : memref<36x512xf32, #tpu.memory_space<vmem>>, vector<4x1xf32>
    tpu.vector_store %arg11[%c12, %c0_17], %16 {strides = array<i32>} : memref<36x512xf32, #tpu.memory_space<vmem>>, vector<4x1xf32>,
    %18 = vector.extract_strided_slice %1 {offsets = [0, 0], sizes = [4, 511], strides = [1, 1]} : vector<4x512xf32> to vector<4x511xf32>
    %c12_18 = arith.constant 12 : index
    %c1 = arith.constant 1 : index
    %19 = vector.load %arg11[%c12_18, %c1] : memref<36x512xf32, #tpu.memory_space<vmem>>, vector<4x511xf32>
    tpu.vector_store %arg11[%c12_18, %c1], %18 {strides = array<i32>} : memref<36x512xf32, #tpu.memory_space<vmem>>, vector<4x511xf32>,
    %c16_19 = arith.constant 16 : index
    %c0_20 = arith.constant 0 : index
    %20 = vector.load %arg11[%c16_19, %c0_20] : memref<36x512xf32, #tpu.memory_space<vmem>>, vector<4x512xf32>
    tpu.vector_store %arg11[%c16_19, %c0_20], %1 {strides = array<i32>} : memref<36x512xf32, #tpu.memory_space<vmem>>, vector<4x512xf32>,
    %21 = vector.extract_strided_slice %1 {offsets = [0, 1], sizes = [4, 511], strides = [1, 1]} : vector<4x512xf32> to vector<4x511xf32>
    %c20 = arith.constant 20 : index
    %c0_21 = arith.constant 0 : index
    %22 = vector.load %arg11[%c20, %c0_21] : memref<36x512xf32, #tpu.memory_space<vmem>>, vector<4x511xf32>
    tpu.vector_store %arg11[%c20, %c0_21], %21 {strides = array<i32>} : memref<36x512xf32, #tpu.memory_space<vmem>>, vector<4x511xf32>,
    %cst_22 = arith.constant 0.000000e+00 : f32
    %23 = vector.broadcast %cst_22 : f32 to vector<4x1xf32>
    %c20_23 = arith.constant 20 : index
    %c511 = arith.constant 511 : index
    %24 = vector.load %arg11[%c20_23, %c511] : memref<36x512xf32, #tpu.memory_space<vmem>>, vector<4x1xf32>
    tpu.vector_store %arg11[%c20_23, %c511], %23 {strides = array<i32>} : memref<36x512xf32, #tpu.memory_space<vmem>>, vector<4x1xf32>,
    %25 = vector.extract_strided_slice %1 {offsets = [0, 15], sizes = [4, 497], strides = [1, 1]} : vector<4x512xf32> to vector<4x497xf32>
    %c24 = arith.constant 24 : index
    %c0_24 = arith.constant 0 : index
    %26 = vector.load %arg11[%c24, %c0_24] : memref<36x512xf32, #tpu.memory_space<vmem>>, vector<4x497xf32>
    tpu.vector_store %arg11[%c24, %c0_24], %25 {strides = array<i32>} : memref<36x512xf32, #tpu.memory_space<vmem>>, vector<4x497xf32>,
    %cst_25 = arith.constant 0.000000e+00 : f32
    %27 = vector.broadcast %cst_25 : f32 to vector<4x15xf32>
    %c24_26 = arith.constant 24 : index
    %c497 = arith.constant 497 : index
    %28 = vector.load %arg11[%c24_26, %c497] : memref<36x512xf32, #tpu.memory_space<vmem>>, vector<4x15xf32>
    tpu.vector_store %arg11[%c24_26, %c497], %27 {strides = array<i32>} : memref<36x512xf32, #tpu.memory_space<vmem>>, vector<4x15xf32>,
    %29 = vector.extract_strided_slice %1 {offsets = [0, 16], sizes = [4, 496], strides = [1, 1]} : vector<4x512xf32> to vector<4x496xf32>
    %c28 = arith.constant 28 : index
    %c0_27 = arith.constant 0 : index
    %30 = vector.load %arg11[%c28, %c0_27] : memref<36x512xf32, #tpu.memory_space<vmem>>, vector<4x496xf32>
    tpu.vector_store %arg11[%c28, %c0_27], %29 {strides = array<i32>} : memref<36x512xf32, #tpu.memory_space<vmem>>, vector<4x496xf32>,
    %cst_28 = arith.constant 0.000000e+00 : f32
    %31 = vector.broadcast %cst_28 : f32 to vector<4x16xf32>
    %c28_29 = arith.constant 28 : index
    %c496 = arith.constant 496 : index
    %32 = vector.load %arg11[%c28_29, %c496] : memref<36x512xf32, #tpu.memory_space<vmem>>, vector<4x16xf32>
    tpu.vector_store %arg11[%c28_29, %c496], %31 {strides = array<i32>} : memref<36x512xf32, #tpu.memory_space<vmem>>, vector<4x16xf32>,
    %33 = vector.extract_strided_slice %1 {offsets = [0, 17], sizes = [4, 495], strides = [1, 1]} : vector<4x512xf32> to vector<4x495xf32>
    %c32 = arith.constant 32 : index
    %c0_30 = arith.constant 0 : index
    %34 = vector.load %arg11[%c32, %c0_30] : memref<36x512xf32, #tpu.memory_space<vmem>>, vector<4x495xf32>
    tpu.vector_store %arg11[%c32, %c0_30], %33 {strides = array<i32>} : memref<36x512xf32, #tpu.memory_space<vmem>>, vector<4x495xf32>,
    %cst_31 = arith.constant 0.000000e+00 : f32
    %35 = vector.broadcast %cst_31 : f32 to vector<4x17xf32>
    %c32_32 = arith.constant 32 : index
    %c495 = arith.constant 495 : index
    %36 = vector.load %arg11[%c32_32, %c495] : memref<36x512xf32, #tpu.memory_space<vmem>>, vector<4x17xf32>
    tpu.vector_store %arg11[%c32_32, %c495], %35 {strides = array<i32>} : memref<36x512xf32, #tpu.memory_space<vmem>>, vector<4x17xf32>,
    %c0_33 = arith.constant 0 : index
    %c0_34 = arith.constant 0 : index
    %37 = vector.load %arg11[%c0_33, %c0_34] : memref<36x512xf32, #tpu.memory_space<vmem>>, vector<36x512xf32>
    %38 = arith.mulf %37, %0 : vector<36x512xf32>
    %cst_35 = arith.constant dense<0.000000e+00> : vector<4x512xf32>
    %39 = tpu.matmul %2, %38, %cst_35 {dimension_numbers = #tpu.dot_dimension_numbers<[1], [0], [0], [1], [0, 0, 1, 1], [], []>} : vector<4x36xf32>, vector<36x512xf32>, vector<4x512xf32> -> vector<4x512xf32>
    %40 = vector.broadcast %3 : vector<4x1xf32> to vector<4x512xf32>
    %41 = arith.addf %39, %40 : vector<4x512xf32>
    %c0_36 = arith.constant 0 : index
    %c0_37 = arith.constant 0 : index
    %42 = vector.load %arg3[%c0_36, %c0_37] : memref<4x1xf32, #tpu.memory_space<vmem>>, vector<4x1xf32>
    %c0_38 = arith.constant 0 : index
    %c0_39 = arith.constant 0 : index
    %43 = vector.load %arg4[%c0_38, %c0_39] : memref<4x1xf32, #tpu.memory_space<vmem>>, vector<4x1xf32>
    %cst_40 = arith.constant dense<0.000000e+00> : vector<4xf32>
    %44 = vector.multi_reduction <add>, %41, %cst_40 [1] : vector<4x512xf32> to vector<4xf32>
    %45 = vector.shape_cast %44 : vector<4xf32> to vector<4x1xf32>
    %46 = arith.mulf %41, %41 : vector<4x512xf32>
    %cst_41 = arith.constant dense<0.000000e+00> : vector<4xf32>
    %47 = vector.multi_reduction <add>, %46, %cst_41 [1] : vector<4x512xf32> to vector<4xf32>
    %48 = vector.shape_cast %47 : vector<4xf32> to vector<4x1xf32>
    %cst_42 = arith.constant 0.001953125 : f32
    %49 = vector.broadcast %cst_42 : f32 to vector<4x1xf32>
    %50 = arith.mulf %45, %49 : vector<4x1xf32>
    %cst_43 = arith.constant 0.001953125 : f32
    %51 = vector.broadcast %cst_43 : f32 to vector<4x1xf32>
    %52 = arith.mulf %48, %51 : vector<4x1xf32>
    %53 = arith.mulf %50, %50 : vector<4x1xf32>
    %54 = arith.subf %52, %53 : vector<4x1xf32>
    %cst_44 = arith.constant 9.99999974E-6 : f32
    %55 = vector.broadcast %cst_44 : f32 to vector<4x1xf32>
    %56 = arith.addf %54, %55 : vector<4x1xf32>
    %57 = math.rsqrt %56 : vector<4x1xf32>
    %58 = arith.mulf %42, %57 : vector<4x1xf32>
    %59 = arith.mulf %50, %58 : vector<4x1xf32>
    %60 = arith.subf %43, %59 : vector<4x1xf32>
    %61 = vector.broadcast %58 : vector<4x1xf32> to vector<4x512xf32>
    %62 = arith.mulf %41, %61 : vector<4x512xf32>
    %63 = vector.broadcast %60 : vector<4x1xf32> to vector<4x512xf32>
    %64 = arith.addf %62, %63 : vector<4x512xf32>
    %cst_45 = arith.constant 0.000000e+00 : f32
    %65 = vector.broadcast %cst_45 : f32 to vector<4x512xf32>
    %66 = arith.maximumf %64, %65 : vector<4x512xf32>
    %c0_46 = arith.constant 0 : index
    %c0_47 = arith.constant 0 : index
    %67 = vector.load %arg5[%c0_46, %c0_47] : memref<4x36xf32, #tpu.memory_space<vmem>>, vector<4x36xf32>
    %c0_48 = arith.constant 0 : index
    %c0_49 = arith.constant 0 : index
    %68 = vector.load %arg6[%c0_48, %c0_49] : memref<4x1xf32, #tpu.memory_space<vmem>>, vector<4x1xf32>
    %cst_50 = arith.constant 0.000000e+00 : f32
    %69 = vector.broadcast %cst_50 : f32 to vector<4x17xf32>
    %c0_51 = arith.constant 0 : index
    %c0_52 = arith.constant 0 : index
    %70 = vector.load %arg11[%c0_51, %c0_52] : memref<36x512xf32, #tpu.memory_space<vmem>>, vector<4x17xf32>
    tpu.vector_store %arg11[%c0_51, %c0_52], %69 {strides = array<i32>} : memref<36x512xf32, #tpu.memory_space<vmem>>, vector<4x17xf32>,
    %71 = vector.extract_strided_slice %66 {offsets = [0, 0], sizes = [4, 495], strides = [1, 1]} : vector<4x512xf32> to vector<4x495xf32>
    %c0_53 = arith.constant 0 : index
    %c17_54 = arith.constant 17 : index
    %72 = vector.load %arg11[%c0_53, %c17_54] : memref<36x512xf32, #tpu.memory_space<vmem>>, vector<4x495xf32>
    tpu.vector_store %arg11[%c0_53, %c17_54], %71 {strides = array<i32>} : memref<36x512xf32, #tpu.memory_space<vmem>>, vector<4x495xf32>,
    %cst_55 = arith.constant 0.000000e+00 : f32
    %73 = vector.broadcast %cst_55 : f32 to vector<4x16xf32>
    %c4_56 = arith.constant 4 : index
    %c0_57 = arith.constant 0 : index
    %74 = vector.load %arg11[%c4_56, %c0_57] : memref<36x512xf32, #tpu.memory_space<vmem>>, vector<4x16xf32>
    tpu.vector_store %arg11[%c4_56, %c0_57], %73 {strides = array<i32>} : memref<36x512xf32, #tpu.memory_space<vmem>>, vector<4x16xf32>,
    %75 = vector.extract_strided_slice %66 {offsets = [0, 0], sizes = [4, 496], strides = [1, 1]} : vector<4x512xf32> to vector<4x496xf32>
    %c4_58 = arith.constant 4 : index
    %c16_59 = arith.constant 16 : index
    %76 = vector.load %arg11[%c4_58, %c16_59] : memref<36x512xf32, #tpu.memory_space<vmem>>, vector<4x496xf32>
    tpu.vector_store %arg11[%c4_58, %c16_59], %75 {strides = array<i32>} : memref<36x512xf32, #tpu.memory_space<vmem>>, vector<4x496xf32>,
    %cst_60 = arith.constant 0.000000e+00 : f32
    %77 = vector.broadcast %cst_60 : f32 to vector<4x15xf32>
    %c8_61 = arith.constant 8 : index
    %c0_62 = arith.constant 0 : index
    %78 = vector.load %arg11[%c8_61, %c0_62] : memref<36x512xf32, #tpu.memory_space<vmem>>, vector<4x15xf32>
    tpu.vector_store %arg11[%c8_61, %c0_62], %77 {strides = array<i32>} : memref<36x512xf32, #tpu.memory_space<vmem>>, vector<4x15xf32>,
    %79 = vector.extract_strided_slice %66 {offsets = [0, 0], sizes = [4, 497], strides = [1, 1]} : vector<4x512xf32> to vector<4x497xf32>
    %c8_63 = arith.constant 8 : index
    %c15_64 = arith.constant 15 : index
    %80 = vector.load %arg11[%c8_63, %c15_64] : memref<36x512xf32, #tpu.memory_space<vmem>>, vector<4x497xf32>
    tpu.vector_store %arg11[%c8_63, %c15_64], %79 {strides = array<i32>} : memref<36x512xf32, #tpu.memory_space<vmem>>, vector<4x497xf32>,
    %cst_65 = arith.constant 0.000000e+00 : f32
    %81 = vector.broadcast %cst_65 : f32 to vector<4x1xf32>
    %c12_66 = arith.constant 12 : index
    %c0_67 = arith.constant 0 : index
    %82 = vector.load %arg11[%c12_66, %c0_67] : memref<36x512xf32, #tpu.memory_space<vmem>>, vector<4x1xf32>
    tpu.vector_store %arg11[%c12_66, %c0_67], %81 {strides = array<i32>} : memref<36x512xf32, #tpu.memory_space<vmem>>, vector<4x1xf32>,
    %83 = vector.extract_strided_slice %66 {offsets = [0, 0], sizes = [4, 511], strides = [1, 1]} : vector<4x512xf32> to vector<4x511xf32>
    %c12_68 = arith.constant 12 : index
    %c1_69 = arith.constant 1 : index
    %84 = vector.load %arg11[%c12_68, %c1_69] : memref<36x512xf32, #tpu.memory_space<vmem>>, vector<4x511xf32>
    tpu.vector_store %arg11[%c12_68, %c1_69], %83 {strides = array<i32>} : memref<36x512xf32, #tpu.memory_space<vmem>>, vector<4x511xf32>,
    %c16_70 = arith.constant 16 : index
    %c0_71 = arith.constant 0 : index
    %85 = vector.load %arg11[%c16_70, %c0_71] : memref<36x512xf32, #tpu.memory_space<vmem>>, vector<4x512xf32>
    tpu.vector_store %arg11[%c16_70, %c0_71], %66 {strides = array<i32>} : memref<36x512xf32, #tpu.memory_space<vmem>>, vector<4x512xf32>,
    %86 = vector.extract_strided_slice %66 {offsets = [0, 1], sizes = [4, 511], strides = [1, 1]} : vector<4x512xf32> to vector<4x511xf32>
    %c20_72 = arith.constant 20 : index
    %c0_73 = arith.constant 0 : index
    %87 = vector.load %arg11[%c20_72, %c0_73] : memref<36x512xf32, #tpu.memory_space<vmem>>, vector<4x511xf32>
    tpu.vector_store %arg11[%c20_72, %c0_73], %86 {strides = array<i32>} : memref<36x512xf32, #tpu.memory_space<vmem>>, vector<4x511xf32>,
    %cst_74 = arith.constant 0.000000e+00 : f32
    %88 = vector.broadcast %cst_74 : f32 to vector<4x1xf32>
    %c20_75 = arith.constant 20 : index
    %c511_76 = arith.constant 511 : index
    %89 = vector.load %arg11[%c20_75, %c511_76] : memref<36x512xf32, #tpu.memory_space<vmem>>, vector<4x1xf32>
    tpu.vector_store %arg11[%c20_75, %c511_76], %88 {strides = array<i32>} : memref<36x512xf32, #tpu.memory_space<vmem>>, vector<4x1xf32>,
    %90 = vector.extract_strided_slice %66 {offsets = [0, 15], sizes = [4, 497], strides = [1, 1]} : vector<4x512xf32> to vector<4x497xf32>
    %c24_77 = arith.constant 24 : index
    %c0_78 = arith.constant 0 : index
    %91 = vector.load %arg11[%c24_77, %c0_78] : memref<36x512xf32, #tpu.memory_space<vmem>>, vector<4x497xf32>
    tpu.vector_store %arg11[%c24_77, %c0_78], %90 {strides = array<i32>} : memref<36x512xf32, #tpu.memory_space<vmem>>, vector<4x497xf32>,
    %cst_79 = arith.constant 0.000000e+00 : f32
    %92 = vector.broadcast %cst_79 : f32 to vector<4x15xf32>
    %c24_80 = arith.constant 24 : index
    %c497_81 = arith.constant 497 : index
    %93 = vector.load %arg11[%c24_80, %c497_81] : memref<36x512xf32, #tpu.memory_space<vmem>>, vector<4x15xf32>
    tpu.vector_store %arg11[%c24_80, %c497_81], %92 {strides = array<i32>} : memref<36x512xf32, #tpu.memory_space<vmem>>, vector<4x15xf32>,
    %94 = vector.extract_strided_slice %66 {offsets = [0, 16], sizes = [4, 496], strides = [1, 1]} : vector<4x512xf32> to vector<4x496xf32>
    %c28_82 = arith.constant 28 : index
    %c0_83 = arith.constant 0 : index
    %95 = vector.load %arg11[%c28_82, %c0_83] : memref<36x512xf32, #tpu.memory_space<vmem>>, vector<4x496xf32>
    tpu.vector_store %arg11[%c28_82, %c0_83], %94 {strides = array<i32>} : memref<36x512xf32, #tpu.memory_space<vmem>>, vector<4x496xf32>,
    %cst_84 = arith.constant 0.000000e+00 : f32
    %96 = vector.broadcast %cst_84 : f32 to vector<4x16xf32>
    %c28_85 = arith.constant 28 : index
    %c496_86 = arith.constant 496 : index
    %97 = vector.load %arg11[%c28_85, %c496_86] : memref<36x512xf32, #tpu.memory_space<vmem>>, vector<4x16xf32>
    tpu.vector_store %arg11[%c28_85, %c496_86], %96 {strides = array<i32>} : memref<36x512xf32, #tpu.memory_space<vmem>>, vector<4x16xf32>,
    %98 = vector.extract_strided_slice %66 {offsets = [0, 17], sizes = [4, 495], strides = [1, 1]} : vector<4x512xf32> to vector<4x495xf32>
    %c32_87 = arith.constant 32 : index
    %c0_88 = arith.constant 0 : index
    %99 = vector.load %arg11[%c32_87, %c0_88] : memref<36x512xf32, #tpu.memory_space<vmem>>, vector<4x495xf32>
    tpu.vector_store %arg11[%c32_87, %c0_88], %98 {strides = array<i32>} : memref<36x512xf32, #tpu.memory_space<vmem>>, vector<4x495xf32>,
    %cst_89 = arith.constant 0.000000e+00 : f32
    %100 = vector.broadcast %cst_89 : f32 to vector<4x17xf32>
    %c32_90 = arith.constant 32 : index
    %c495_91 = arith.constant 495 : index
    %101 = vector.load %arg11[%c32_90, %c495_91] : memref<36x512xf32, #tpu.memory_space<vmem>>, vector<4x17xf32>
    tpu.vector_store %arg11[%c32_90, %c495_91], %100 {strides = array<i32>} : memref<36x512xf32, #tpu.memory_space<vmem>>, vector<4x17xf32>,
    %c0_92 = arith.constant 0 : index
    %c0_93 = arith.constant 0 : index
    %102 = vector.load %arg11[%c0_92, %c0_93] : memref<36x512xf32, #tpu.memory_space<vmem>>, vector<36x512xf32>
    %103 = arith.mulf %102, %0 : vector<36x512xf32>
    %cst_94 = arith.constant dense<0.000000e+00> : vector<4x512xf32>
    %104 = tpu.matmul %67, %103, %cst_94 {dimension_numbers = #tpu.dot_dimension_numbers<[1], [0], [0], [1], [0, 0, 1, 1], [], []>} : vector<4x36xf32>, vector<36x512xf32>, vector<4x512xf32> -> vector<4x512xf32>
    %105 = vector.broadcast %68 : vector<4x1xf32> to vector<4x512xf32>
    %106 = arith.addf %104, %105 : vector<4x512xf32>
    %c0_95 = arith.constant 0 : index
    %c0_96 = arith.constant 0 : index
    %107 = vector.load %arg7[%c0_95, %c0_96] : memref<4x1xf32, #tpu.memory_space<vmem>>, vector<4x1xf32>
    %c0_97 = arith.constant 0 : index
    %c0_98 = arith.constant 0 : index
    %108 = vector.load %arg8[%c0_97, %c0_98] : memref<4x1xf32, #tpu.memory_space<vmem>>, vector<4x1xf32>
    %cst_99 = arith.constant dense<0.000000e+00> : vector<4xf32>
    %109 = vector.multi_reduction <add>, %106, %cst_99 [1] : vector<4x512xf32> to vector<4xf32>
    %110 = vector.shape_cast %109 : vector<4xf32> to vector<4x1xf32>
    %111 = arith.mulf %106, %106 : vector<4x512xf32>
    %cst_100 = arith.constant dense<0.000000e+00> : vector<4xf32>
    %112 = vector.multi_reduction <add>, %111, %cst_100 [1] : vector<4x512xf32> to vector<4xf32>
    %113 = vector.shape_cast %112 : vector<4xf32> to vector<4x1xf32>
    %cst_101 = arith.constant 0.001953125 : f32
    %114 = vector.broadcast %cst_101 : f32 to vector<4x1xf32>
    %115 = arith.mulf %110, %114 : vector<4x1xf32>
    %cst_102 = arith.constant 0.001953125 : f32
    %116 = vector.broadcast %cst_102 : f32 to vector<4x1xf32>
    %117 = arith.mulf %113, %116 : vector<4x1xf32>
    %118 = arith.mulf %115, %115 : vector<4x1xf32>
    %119 = arith.subf %117, %118 : vector<4x1xf32>
    %cst_103 = arith.constant 9.99999974E-6 : f32
    %120 = vector.broadcast %cst_103 : f32 to vector<4x1xf32>
    %121 = arith.addf %119, %120 : vector<4x1xf32>
    %122 = math.rsqrt %121 : vector<4x1xf32>
    %123 = arith.mulf %107, %122 : vector<4x1xf32>
    %124 = arith.mulf %115, %123 : vector<4x1xf32>
    %125 = arith.subf %108, %124 : vector<4x1xf32>
    %126 = vector.broadcast %123 : vector<4x1xf32> to vector<4x512xf32>
    %127 = arith.mulf %106, %126 : vector<4x512xf32>
    %128 = vector.broadcast %125 : vector<4x1xf32> to vector<4x512xf32>
    %129 = arith.addf %127, %128 : vector<4x512xf32>
    %130 = arith.addf %129, %1 : vector<4x512xf32>
    %cst_104 = arith.constant 0.000000e+00 : f32
    %131 = vector.broadcast %cst_104 : f32 to vector<4x512xf32>
    %132 = arith.maximumf %130, %131 : vector<4x512xf32>
    %c0_105 = arith.constant 0 : index
    %c0_106 = arith.constant 0 : index
    %133 = vector.load %arg10[%c0_105, %c0_106] : memref<4x512xf32, #tpu.memory_space<vmem>>, vector<4x512xf32>
    tpu.vector_store %arg10[%c0_105, %c0_106], %132 {strides = array<i32>} : memref<4x512xf32, #tpu.memory_space<vmem>>, vector<4x512xf32>,
    return
  }
}

</mosaic_0001>

<llo_original>
// kernel: tpu_custom_call.1
$region0: #{tpu_custom_call.1}
  #allocation0 [shape = 'u32[]', space=smem, size = 0x4, offset = 0x4, fixed_abs, tag = 'smem constant byte address 0x4 - core index']
  #allocation1 [shape = 'u32[72,128]{1,0:T(1,128)}', space=vmem, size = 0x9000, scoped, tag = 'internal scratch']
  #allocation2 [shape = 'f32[36,512]{1,0:T(8,128)}', space=vmem, size = 0x14000, scoped, tag = 'scratch operand']
  %s0 = inlined_call_operand.hbm [shape: f32[4,512], index: 0, kind: input, shape index: {}]
  %s1 = inlined_call_operand.vmem [shape: f32[4,36], index: 1, kind: input, shape index: {}]
  %s2 = inlined_call_operand.vmem [shape: f32[4,1], index: 2, kind: input, shape index: {}]
  %s3 = inlined_call_operand.vmem [shape: f32[4,1], index: 3, kind: input, shape index: {}]
  %s4 = inlined_call_operand.vmem [shape: f32[4,1], index: 4, kind: input, shape index: {}]
  %s5 = inlined_call_operand.vmem [shape: f32[4,36], index: 5, kind: input, shape index: {}]
  %s6 = inlined_call_operand.vmem [shape: f32[4,1], index: 6, kind: input, shape index: {}]
  %s7 = inlined_call_operand.vmem [shape: f32[4,1], index: 7, kind: input, shape index: {}]
  %s8 = inlined_call_operand.vmem [shape: f32[4,1], index: 8, kind: input, shape index: {}]
  %s9 = inlined_call_operand.hbm [shape: f32[36,512], index: 9, kind: input, shape index: {}]
  %s10 = inlined_call_operand.hbm [shape: f32[4,512], index: 10, kind: output, shape index: {}]
  %s11 = sld [smem:[#allocation0]]
  $region58: #{tpu_custom_call.1} parent=0
    _
  %s13 = ssub.s32 1, %s11
  %s14 = scalar_select 0, %s13, %s11
  $region1: #{tpu_custom_call.1} parent=0
    #allocation3 [shape = 'u8[8192]{0}', space=vmem, size = 0x2000, scoped, tag = 'input window, operand 0, single buffered']
    #allocation4 [shape = 's32[1]{0}', space=sflag, size = 0x4, scoped, tag = 'scoped memory for tpu_custom_call.1']
    #allocation5 [shape = 's32[1]{0}', space=sflag, size = 0x4, scoped, tag = 'scoped memory for tpu_custom_call.1']
    #allocation6 [shape = 'u8[81920]{0}', space=vmem, size = 0x14000, scoped, tag = 'input window, operand 9, single buffered']
    #allocation7 [shape = 's32[1]{0}', space=sflag, size = 0x4, scoped, tag = 'scoped memory for tpu_custom_call.1']
    #allocation8 [shape = 'u8[8192]{0}', space=vmem, size = 0x2000, scoped, tag = 'output window, operand 0, single buffered']
    %15 = vsyncpa [#allocation4], 0
    %16 = vsyncpa [#allocation7], 0
    %17 = vsyncpa [#allocation5], 0
    // Predicated region
    $region2: #{tpu_custom_call.1} parent=1 // pred_check
      _
    $region3: #{tpu_custom_call.1} parent=1 // pred_check_branch
      %19 = sbr.rel (0) target = $region5
    $region4: #{tpu_custom_call.1} parent=1 // pred_region
      %21 = vsyncadd [#allocation4], 0
      %s23 = sshll.u32 %s0, 4
      %s24 = int_to_ptr.hbm [resolvable:$true] %s23
      %s25 = sshll.u32 [#allocation3], 4
      %s26 = int_to_ptr.vmem [resolvable:$true] %s25
      %28 = dma.hbm_to_vmem [thread:$0]  %s24, 256, %s26, [#allocation4]
    $region5: #{tpu_custom_call.1} parent=1 // pred_fallthru
      _
    // Predicated region
    $region6: #{tpu_custom_call.1} parent=1 // pred_check
      _
    $region7: #{tpu_custom_call.1} parent=1 // pred_check_branch
      %30 = sbr.rel (0) target = $region9
    $region8: #{tpu_custom_call.1} parent=1 // pred_region
      _
    $region9: #{tpu_custom_call.1} parent=1 // pred_fallthru
      _
    // Predicated region
    $region10: #{tpu_custom_call.1} parent=1 // pred_check
      _
    $region11: #{tpu_custom_call.1} parent=1 // pred_check_branch
      %32 = sbr.rel (0) target = $region13
    $region12: #{tpu_custom_call.1} parent=1 // pred_region
      _
    $region13: #{tpu_custom_call.1} parent=1 // pred_fallthru
      _
    // Predicated region
    $region14: #{tpu_custom_call.1} parent=1 // pred_check
      _
    $region15: #{tpu_custom_call.1} parent=1 // pred_check_branch
      %34 = sbr.rel (0) target = $region17
    $region16: #{tpu_custom_call.1} parent=1 // pred_region
      _
    $region17: #{tpu_custom_call.1} parent=1 // pred_fallthru
      _
    // Predicated region
    $region18: #{tpu_custom_call.1} parent=1 // pred_check
      _
    $region19: #{tpu_custom_call.1} parent=1 // pred_check_branch
      %36 = sbr.rel (0) target = $region21
    $region20: #{tpu_custom_call.1} parent=1 // pred_region
      _
    $region21: #{tpu_custom_call.1} parent=1 // pred_fallthru
      _
    // Predicated region
    $region22: #{tpu_custom_call.1} parent=1 // pred_check
      _
    $region23: #{tpu_custom_call.1} parent=1 // pred_check_branch
      %38 = sbr.rel (0) target = $region25
    $region24: #{tpu_custom_call.1} parent=1 // pred_region
      _
    $region25: #{tpu_custom_call.1} parent=1 // pred_fallthru
      _
    // Predicated region
    $region26: #{tpu_custom_call.1} parent=1 // pred_check
      _
    $region27: #{tpu_custom_call.1} parent=1 // pred_check_branch
      %40 = sbr.rel (0) target = $region29
    $region28: #{tpu_custom_call.1} parent=1 // pred_region
      _
    $region29: #{tpu_custom_call.1} parent=1 // pred_fallthru
      _
    // Predicated region
    $region30: #{tpu_custom_call.1} parent=1 // pred_check
      _
    $region31: #{tpu_custom_call.1} parent=1 // pred_check_branch
      %42 = sbr.rel (0) target = $region33
    $region32: #{tpu_custom_call.1} parent=1 // pred_region
      _
    $region33: #{tpu_custom_call.1} parent=1 // pred_fallthru
      _
    // Predicated region
    $region34: #{tpu_custom_call.1} parent=1 // pred_check
      _
    $region35: #{tpu_custom_call.1} parent=1 // pred_check_branch
      %44 = sbr.rel (0) target = $region37
    $region36: #{tpu_custom_call.1} parent=1 // pred_region
      _
    $region37: #{tpu_custom_call.1} parent=1 // pred_fallthru
      _
    // Predicated region
    $region38: #{tpu_custom_call.1} parent=1 // pred_check
      _
    $region39: #{tpu_custom_call.1} parent=1 // pred_check_branch
      %46 = sbr.rel (0) target = $region41
    $region40: #{tpu_custom_call.1} parent=1 // pred_region
      %48 = vsyncadd [#allocation7], 0
      %s49 = sshll.u32 %s9, 4
      %s50 = int_to_ptr.hbm [resolvable:$true] %s49
      %s51 = sshll.u32 [#allocation6], 4
      %s52 = int_to_ptr.vmem [resolvable:$true] %s51
      %57 = dma.hbm_to_vmem [thread:$0]  %s50, 2560, %s52, [#allocation7], 512, 512, 32
    $region41: #{tpu_custom_call.1} parent=1 // pred_fallthru
      _
    // Predicated region
    $region42: #{tpu_custom_call.1} parent=1 // pred_check
      _
    $region43: #{tpu_custom_call.1} parent=1 // pred_check_branch
      %59 = sbr.rel (0) target = $region45
    $region44: #{tpu_custom_call.1} parent=1 // pred_region
      %61 = dma.done [#allocation4], 256
    $region45: #{tpu_custom_call.1} parent=1 // pred_fallthru
      _
    // Predicated region
    $region46: #{tpu_custom_call.1} parent=1 // pred_check
      _
    $region47: #{tpu_custom_call.1} parent=1 // pred_check_branch
      %63 = sbr.rel (0) target = $region49
    $region48: #{tpu_custom_call.1} parent=1 // pred_region
      %65 = dma.done [#allocation7], 2560
    $region49: #{tpu_custom_call.1} parent=1 // pred_fallthru
      _
    %v66 = vld [vmem:[#allocation6] sm:$0xff]
    %v67 = vld [vmem:[#allocation6 + $0x8] sm:$0xff]
    %v68 = vld [vmem:[#allocation6 + $0x10] sm:$0xff]
    %v69 = vld [vmem:[#allocation6 + $0x18] sm:$0xff]
    %v70 = vld [vmem:[#allocation6 + $0x20] sm:$0xff]
    %v71 = vld [vmem:[#allocation6 + $0x28] sm:$0xff]
    %v72 = vld [vmem:[#allocation6 + $0x30] sm:$0xff]
    %v73 = vld [vmem:[#allocation6 + $0x38] sm:$0xff]
    %v74 = vld [vmem:[#allocation6 + $0x40] sm:$0xff]
    %v75 = vld [vmem:[#allocation6 + $0x48] sm:$0xff]
    %v76 = vld [vmem:[#allocation6 + $0x50] sm:$0xff]
    %v77 = vld [vmem:[#allocation6 + $0x58] sm:$0xff]
    %v78 = vld [vmem:[#allocation6 + $0x60] sm:$0xff]
    %v79 = vld [vmem:[#allocation6 + $0x68] sm:$0xff]
    %v80 = vld [vmem:[#allocation6 + $0x70] sm:$0xff]
    %v81 = vld [vmem:[#allocation6 + $0x78] sm:$0xff]
    %v82 = vld [vmem:[#allocation6 + $0x80] sm:$0xf]
    %v83 = vld [vmem:[#allocation6 + $0x88] sm:$0xf]
    %v84 = vld [vmem:[#allocation6 + $0x90] sm:$0xf]
    %v85 = vld [vmem:[#allocation6 + $0x98] sm:$0xf]
    %v86 = vld [vmem:[#allocation3] sm:$0xff]
    %v87 = vld [vmem:[#allocation3 + $0x8] sm:$0xff]
    %v88 = vld [vmem:[%s1] sm:$0xf]
    %v89 = vld [vmem:[%s2] sm:$0xf]
    %vm90 = vcmask 134144
    %91 = vst.msk [vmem:[#allocation2] sm:$0xf] %vm90, 0.0
    %94 = vst [vmem:[#allocation1] ss:$2 sm:$0xff] %v86
    %s95 = scalar_lea.vmem [#allocation1], 16
    %96 = vst [vmem:[%s95] ss:$2 sm:$0xff] %v87
    %v97 = vld.sshfl [vmem:[#allocation1] sm:$0xff pattern:$0x75316420]
    %v98 = vld.sshfl [vmem:[#allocation1 + $0x8] sm:$0xff pattern:$0x75316420]
    %v99 = vld.sshfl [vmem:[#allocation1 + $0x10] sm:$0xff pattern:$0x75316420]
    %v100 = vld.sshfl [vmem:[#allocation1 + $0x18] sm:$0xff pattern:$0x75316420]
    %101 = vrot.lane.b32.xlu0 %v97, 17
    %v102 = vpop.permute.xlu0 %101
    %103 = vrot.lane.b32.xlu0 %v98, 17
    %v104 = vpop.permute.xlu0 %103
    %105 = vrot.lane.b32.xlu0 %v99, 17
    %v106 = vpop.permute.xlu0 %105
    %107 = vrot.lane.b32.xlu0 %v100, 17
    %v108 = vpop.permute.xlu0 %107
    %vm109 = vcmask 138240
    %v110 = vsel %vm109, %v102, %v104
    %v111 = vsel %vm109, %v104, %v106
    %v112 = vsel %vm109, %v106, %v108
    %vm117 = vcmask 1043592
    %118 = vst.msk [vmem:[#allocation2] sm:$0xf] %vm117, %v102
    %119 = vst [vmem:[#allocation2 + $0x8] sm:$0xf] %v110
    %120 = vst [vmem:[#allocation2 + $0x10] sm:$0xf] %v111
    %121 = vst [vmem:[#allocation2 + $0x18] sm:$0xf] %v112
    %vm122 = vcmask 130052
    %123 = vst.msk [vmem:[#allocation2] sm:$0xf0] %vm122, 0.0
    %s124 = scalar_lea.vmem [#allocation1], 1
    %125 = vst [vmem:[%s124] ss:$2 sm:$0xff] %v86
    %s126 = scalar_lea.vmem [#allocation1], 17
    %127 = vst [vmem:[%s126] ss:$2 sm:$0xff] %v87
    %v128 = vld.sshfl [vmem:[#allocation1] sm:$0xff pattern:$0x75316420]
    %v129 = vld.sshfl [vmem:[#allocation1 + $0x8] sm:$0xff pattern:$0x75316420]
    %v130 = vld.sshfl [vmem:[#allocation1 + $0x10] sm:$0xff pattern:$0x75316420]
    %v131 = vld.sshfl [vmem:[#allocation1 + $0x18] sm:$0xff pattern:$0x75316420]
    %132 = vrot.lane.b32.xlu0 %v128, 16
    %v133 = vpop.permute.xlu0 %132
    %134 = vrot.lane.b32.xlu0 %v129, 16
    %v135 = vpop.permute.xlu0 %134
    %136 = vrot.lane.b32.xlu0 %v130, 16
    %v137 = vpop.permute.xlu0 %136
    %138 = vrot.lane.b32.xlu0 %v131, 16
    %v139 = vpop.permute.xlu0 %138
    %vm140 = vcmask 130048
    %v141 = vsel %vm140, %v133, %v135
    %v142 = vsel %vm140, %v135, %v137
    %v143 = vsel %vm140, %v137, %v139
    %vm148 = vcmask 1047684
    %149 = vst.msk [vmem:[#allocation2] sm:$0xf0] %vm148, %v133
    %150 = vst [vmem:[#allocation2 + $0x8] sm:$0xf0] %v141
    %151 = vst [vmem:[#allocation2 + $0x10] sm:$0xf0] %v142
    %152 = vst [vmem:[#allocation2 + $0x18] sm:$0xf0] %v143
    %vm153 = vcmask 117760
    %154 = vst.msk [vmem:[#allocation2 + $0x20] sm:$0xf] %vm153, 0.0
    %155 = vst [vmem:[#allocation1] ss:$2 sm:$0xff] %v86
    %s156 = scalar_lea.vmem [#allocation1], 16
    %157 = vst [vmem:[%s156] ss:$2 sm:$0xff] %v87
    %v158 = vld.sshfl [vmem:[#allocation1] sm:$0xff pattern:$0x75316420]
    %v159 = vld.sshfl [vmem:[#allocation1 + $0x8] sm:$0xff pattern:$0x75316420]
    %v160 = vld.sshfl [vmem:[#allocation1 + $0x10] sm:$0xff pattern:$0x75316420]
    %v161 = vld.sshfl [vmem:[#allocation1 + $0x18] sm:$0xff pattern:$0x75316420]
    %162 = vrot.lane.b32.xlu0 %v158, 15
    %v163 = vpop.permute.xlu0 %162
    %164 = vrot.lane.b32.xlu0 %v159, 15
    %v165 = vpop.permute.xlu0 %164
    %166 = vrot.lane.b32.xlu0 %v160, 15
    %v167 = vpop.permute.xlu0 %166
    %168 = vrot.lane.b32.xlu0 %v161, 15
    %v169 = vpop.permute.xlu0 %168
    %vm170 = vcmask 121856
    %v171 = vsel %vm170, %v163, %v165
    %v172 = vsel %vm170, %v165, %v167
    %v173 = vsel %vm170, %v167, %v169
    %vm178 = vcmask 1043576
    %179 = vst.msk [vmem:[#allocation2 + $0x20] sm:$0xf] %vm178, %v163
    %180 = vst [vmem:[#allocation2 + $0x28] sm:$0xf] %v171
    %181 = vst [vmem:[#allocation2 + $0x30] sm:$0xf] %v172
    %182 = vst [vmem:[#allocation2 + $0x38] sm:$0xf] %v173
    %vm183 = vcmask 7172
    %184 = vst.msk [vmem:[#allocation2 + $0x20] sm:$0xf0] %vm183, 0.0
    %s185 = scalar_lea.vmem [#allocation1], 1
    %186 = vst [vmem:[%s185] ss:$2 sm:$0xff] %v86
    %s187 = scalar_lea.vmem [#allocation1], 17
    %188 = vst [vmem:[%s187] ss:$2 sm:$0xff] %v87
    %v189 = vld.sshfl [vmem:[#allocation1] sm:$0xff pattern:$0x75316420]
    %v190 = vld.sshfl [vmem:[#allocation1 + $0x8] sm:$0xff pattern:$0x75316420]
    %v191 = vld.sshfl [vmem:[#allocation1 + $0x10] sm:$0xff pattern:$0x75316420]
    %v192 = vld.sshfl [vmem:[#allocation1 + $0x18] sm:$0xff pattern:$0x75316420]
    %193 = vrot.lane.b32.xlu0 %v189, 1
    %v194 = vpop.permute.xlu0 %193
    %195 = vrot.lane.b32.xlu0 %v190, 1
    %v196 = vpop.permute.xlu0 %195
    %197 = vrot.lane.b32.xlu0 %v191, 1
    %v198 = vpop.permute.xlu0 %197
    %199 = vrot.lane.b32.xlu0 %v192, 1
    %v200 = vpop.permute.xlu0 %199
    %vm201 = vcmask 7168
    %v202 = vsel %vm201, %v194, %v196
    %v203 = vsel %vm201, %v196, %v198
    %v204 = vsel %vm201, %v198, %v200
    %vm209 = vcmask 1047564
    %210 = vst.msk [vmem:[#allocation2 + $0x20] sm:$0xf0] %vm209, %v194
    %211 = vst [vmem:[#allocation2 + $0x28] sm:$0xf0] %v202
    %212 = vst [vmem:[#allocation2 + $0x30] sm:$0xf0] %v203
    %213 = vst [vmem:[#allocation2 + $0x38] sm:$0xf0] %v204
    %214 = vst [vmem:[#allocation1] ss:$2 sm:$0xff] %v86
    %s215 = scalar_lea.vmem [#allocation1], 16
    %216 = vst [vmem:[%s215] ss:$2 sm:$0xff] %v87
    %v217 = vld.sshfl [vmem:[#allocation1] sm:$0xff pattern:$0x75316420]
    %v218 = vld.sshfl [vmem:[#allocation1 + $0x8] sm:$0xff pattern:$0x75316420]
    %v219 = vld.sshfl [vmem:[#allocation1 + $0x10] sm:$0xff pattern:$0x75316420]
    %v220 = vld.sshfl [vmem:[#allocation1 + $0x18] sm:$0xff pattern:$0x75316420]
    %225 = vst [vmem:[#allocation2 + $0x40] sm:$0xf] %v217
    %226 = vst [vmem:[#allocation2 + $0x48] sm:$0xf] %v218
    %227 = vst [vmem:[#allocation2 + $0x50] sm:$0xf] %v219
    %228 = vst [vmem:[#allocation2 + $0x58] sm:$0xf] %v220
    %s229 = scalar_lea.vmem [#allocation1], 1
    %230 = vst [vmem:[%s229] ss:$2 sm:$0xff] %v86
    %s231 = scalar_lea.vmem [#allocation1], 17
    %232 = vst [vmem:[%s231] ss:$2 sm:$0xff] %v87
    %v233 = vld.sshfl [vmem:[#allocation1] sm:$0xff pattern:$0x75316420]
    %v234 = vld.sshfl [vmem:[#allocation1 + $0x8] sm:$0xff pattern:$0x75316420]
    %v235 = vld.sshfl [vmem:[#allocation1 + $0x10] sm:$0xff pattern:$0x75316420]
    %v236 = vld.sshfl [vmem:[#allocation1 + $0x18] sm:$0xff pattern:$0x75316420]
    %237 = vrot.lane.b32.xlu0 %v233, 127
    %v238 = vpop.permute.xlu0 %237
    %239 = vrot.lane.b32.xlu0 %v234, 127
    %v240 = vpop.permute.xlu0 %239
    %241 = vrot.lane.b32.xlu0 %v235, 127
    %v242 = vpop.permute.xlu0 %241
    %243 = vrot.lane.b32.xlu0 %v236, 127
    %v244 = vpop.permute.xlu0 %243
    %vm245 = vcmask 1039360
    %v246 = vsel %vm245, %v238, %v240
    %v247 = vsel %vm245, %v240, %v242
    %v248 = vsel %vm245, %v242, %v244
    %253 = vst [vmem:[#allocation2 + $0x40] sm:$0xf0] %v246
    %254 = vst [vmem:[#allocation2 + $0x48] sm:$0xf0] %v247
    %255 = vst [vmem:[#allocation2 + $0x50] sm:$0xf0] %v248
    %vm256 = vcmask 1039364
    %257 = vst.msk [vmem:[#allocation2 + $0x58] sm:$0xf0] %vm256, %v244
    %vm258 = vcmask 1048572
    %259 = vst.msk [vmem:[#allocation2 + $0x58] sm:$0xf0] %vm258, 0.0
    %260 = vst [vmem:[#allocation1] ss:$2 sm:$0xff] %v86
    %s261 = scalar_lea.vmem [#allocation1], 16
    %262 = vst [vmem:[%s261] ss:$2 sm:$0xff] %v87
    %v263 = vld.sshfl [vmem:[#allocation1] sm:$0xff pattern:$0x75316420]
    %v264 = vld.sshfl [vmem:[#allocation1 + $0x8] sm:$0xff pattern:$0x75316420]
    %v265 = vld.sshfl [vmem:[#allocation1 + $0x10] sm:$0xff pattern:$0x75316420]
    %v266 = vld.sshfl [vmem:[#allocation1 + $0x18] sm:$0xff pattern:$0x75316420]
    %267 = vrot.lane.b32.xlu0 %v263, 113
    %v268 = vpop.permute.xlu0 %267
    %269 = vrot.lane.b32.xlu0 %v264, 113
    %v270 = vpop.permute.xlu0 %269
    %271 = vrot.lane.b32.xlu0 %v265, 113
    %v272 = vpop.permute.xlu0 %271
    %273 = vrot.lane.b32.xlu0 %v266, 113
    %v274 = vpop.permute.xlu0 %273
    %vm275 = vcmask 924672
    %v276 = vsel %vm275, %v268, %v270
    %v277 = vsel %vm275, %v270, %v272
    %v278 = vsel %vm275, %v272, %v274
    %283 = vst [vmem:[#allocation2 + $0x60] sm:$0xf] %v276
    %284 = vst [vmem:[#allocation2 + $0x68] sm:$0xf] %v277
    %285 = vst [vmem:[#allocation2 + $0x70] sm:$0xf] %v278
    %vm286 = vcmask 920576
    %287 = vst.msk [vmem:[#allocation2 + $0x78] sm:$0xf] %vm286, %v274
    %vm288 = vcmask 1044360
    %289 = vst.msk [vmem:[#allocation2 + $0x78] sm:$0xf] %vm288, 0.0
    %s290 = scalar_lea.vmem [#allocation1], 1
    %291 = vst [vmem:[%s290] ss:$2 sm:$0xff] %v86
    %s292 = scalar_lea.vmem [#allocation1], 17
    %293 = vst [vmem:[%s292] ss:$2 sm:$0xff] %v87
    %v294 = vld.sshfl [vmem:[#allocation1] sm:$0xff pattern:$0x75316420]
    %v295 = vld.sshfl [vmem:[#allocation1 + $0x8] sm:$0xff pattern:$0x75316420]
    %v296 = vld.sshfl [vmem:[#allocation1 + $0x10] sm:$0xff pattern:$0x75316420]
    %v297 = vld.sshfl [vmem:[#allocation1 + $0x18] sm:$0xff pattern:$0x75316420]
    %298 = vrot.lane.b32.xlu0 %v294, 112
    %v299 = vpop.permute.xlu0 %298
    %300 = vrot.lane.b32.xlu0 %v295, 112
    %v301 = vpop.permute.xlu0 %300
    %302 = vrot.lane.b32.xlu0 %v296, 112
    %v303 = vpop.permute.xlu0 %302
    %304 = vrot.lane.b32.xlu0 %v297, 112
    %v305 = vpop.permute.xlu0 %304
    %vm306 = vcmask 916480
    %v307 = vsel %vm306, %v299, %v301
    %v308 = vsel %vm306, %v301, %v303
    %v309 = vsel %vm306, %v303, %v305
    %314 = vst [vmem:[#allocation2 + $0x60] sm:$0xf0] %v307
    %315 = vst [vmem:[#allocation2 + $0x68] sm:$0xf0] %v308
    %316 = vst [vmem:[#allocation2 + $0x70] sm:$0xf0] %v309
    %vm317 = vcmask 916484
    %318 = vst.msk [vmem:[#allocation2 + $0x78] sm:$0xf0] %vm317, %v305
    %vm319 = vcmask 1048452
    %320 = vst.msk [vmem:[#allocation2 + $0x78] sm:$0xf0] %vm319, 0.0
    %321 = vst [vmem:[#allocation1] ss:$2 sm:$0xff] %v86
    %s322 = scalar_lea.vmem [#allocation1], 16
    %323 = vst [vmem:[%s322] ss:$2 sm:$0xff] %v87
    %v324 = vld.sshfl [vmem:[#allocation1] sm:$0xff pattern:$0x75316420]
    %v325 = vld.sshfl [vmem:[#allocation1 + $0x8] sm:$0xff pattern:$0x75316420]
    %v326 = vld.sshfl [vmem:[#allocation1 + $0x10] sm:$0xff pattern:$0x75316420]
    %v327 = vld.sshfl [vmem:[#allocation1 + $0x18] sm:$0xff pattern:$0x75316420]
    %328 = vrot.lane.b32.xlu0 %v324, 111
    %v329 = vpop.permute.xlu0 %328
    %330 = vrot.lane.b32.xlu0 %v325, 111
    %v331 = vpop.permute.xlu0 %330
    %332 = vrot.lane.b32.xlu0 %v326, 111
    %v333 = vpop.permute.xlu0 %332
    %334 = vrot.lane.b32.xlu0 %v327, 111
    %v335 = vpop.permute.xlu0 %334
    %vm336 = vcmask 908288
    %v337 = vsel %vm336, %v329, %v331
    %v338 = vsel %vm336, %v331, %v333
    %v339 = vsel %vm336, %v333, %v335
    %344 = vst [vmem:[#allocation2 + $0x80] sm:$0xf] %v337
    %345 = vst [vmem:[#allocation2 + $0x88] sm:$0xf] %v338
    %346 = vst [vmem:[#allocation2 + $0x90] sm:$0xf] %v339
    %vm347 = vcmask 904192
    %348 = vst.msk [vmem:[#allocation2 + $0x98] sm:$0xf] %vm347, %v335
    %vm349 = vcmask 1044344
    %350 = vst.msk [vmem:[#allocation2 + $0x98] sm:$0xf] %vm349, 0.0
    %v351 = vld [vmem:[#allocation2] sm:$0xff]
    %v352 = vld [vmem:[#allocation2 + $0x8] sm:$0xff]
    %v353 = vld [vmem:[#allocation2 + $0x10] sm:$0xff]
    %v354 = vld [vmem:[#allocation2 + $0x18] sm:$0xff]
    %v355 = vld [vmem:[#allocation2 + $0x20] sm:$0xff]
    %v356 = vld [vmem:[#allocation2 + $0x28] sm:$0xff]
    %v357 = vld [vmem:[#allocation2 + $0x30] sm:$0xff]
    %v358 = vld [vmem:[#allocation2 + $0x38] sm:$0xff]
    %v359 = vld [vmem:[#allocation2 + $0x40] sm:$0xff]
    %v360 = vld [vmem:[#allocation2 + $0x48] sm:$0xff]
    %v361 = vld [vmem:[#allocation2 + $0x50] sm:$0xff]
    %v362 = vld [vmem:[#allocation2 + $0x58] sm:$0xff]
    %v363 = vld [vmem:[#allocation2 + $0x60] sm:$0xff]
    %v364 = vld [vmem:[#allocation2 + $0x68] sm:$0xff]
    %v365 = vld [vmem:[#allocation2 + $0x70] sm:$0xff]
    %v366 = vld [vmem:[#allocation2 + $0x78] sm:$0xff]
    %v367 = vld [vmem:[#allocation2 + $0x80] sm:$0xf]
    %v368 = vld [vmem:[#allocation2 + $0x88] sm:$0xf]
    %v369 = vld [vmem:[#allocation2 + $0x90] sm:$0xf]
    %v370 = vld [vmem:[#allocation2 + $0x98] sm:$0xf]
    %v371 = vmul.f32 %v351, %v66
    %v372 = vmul.f32 %v352, %v67
    %v373 = vmul.f32 %v353, %v68
    %v374 = vmul.f32 %v354, %v69
    %v375 = vmul.f32 %v355, %v70
    %v376 = vmul.f32 %v356, %v71
    %v377 = vmul.f32 %v357, %v72
    %v378 = vmul.f32 %v358, %v73
    %v379 = vmul.f32 %v359, %v74
    %v380 = vmul.f32 %v360, %v75
    %v381 = vmul.f32 %v361, %v76
    %v382 = vmul.f32 %v362, %v77
    %v383 = vmul.f32 %v363, %v78
    %v384 = vmul.f32 %v364, %v79
    %v385 = vmul.f32 %v365, %v80
    %v386 = vmul.f32 %v366, %v81
    %v387 = vmul.f32 %v367, %v82
    %v388 = vmul.f32 %v368, %v83
    %v389 = vmul.f32 %v369, %v84
    %v390 = vmul.f32 %v370, %v85
    %392 = vset.pattern.permute.xlu0 0
    %393 = vperm.xlu0 %392, %v89
    %v394 = vpop.permute.xlu0 %393
    %vm396 = vcmask 293888
    %v398 = vsel %vm396, %v88, 0
    %vm400 = vcmask 1043456
    %v402 = vsel %vm400, %v387, 0
    %v405 = vsel %vm400, %v388, 0
    %v408 = vsel %vm400, %v389, 0
    %v411 = vsel %vm400, %v390, 0
    %413 = vmatpush.msra.mxu0 0.0
    %414 = vmatpush.msra.mxu0 0.0
    %415 = vmatpush.msra.mxu0 0.0
    %416 = vmatpush.msra.mxu0 0.0
    %417 = vmatpush.msra.mxu0 0.0
    %418 = vmatpush.msra.mxu0 0.0
    %419 = vmatpush.msra.mxu0 0.0
    %420 = vmatpush.msra.mxu0 0.0
    %421 = vmatpush.msra.mxu0 0.0
    %422 = vmatpush.msra.mxu0 0.0
    %423 = vmatpush.msra.mxu0 0.0
    %424 = vmatpush.msra.mxu0 %v402
    %425 = vmatpush.msra.mxu0 %v383
    %426 = vmatpush.msra.mxu0 %v379
    %427 = vmatpush.msra.mxu0 %v375
    %428 = vmatpush.msra.mxu0 %v371
    %429 = vmatmul.f32.gmra.mxu0 %v398
    %v430 = vpop.f32.mrf.mxu0
    %v431 = vadd.f32 %v394, %v430
    %432 = vdwg.mxu0
    %433 = vmatpush.msra.mxu0 0.0
    %434 = vmatpush.msra.mxu0 0.0
    %435 = vmatpush.msra.mxu0 0.0
    %436 = vmatpush.msra.mxu0 0.0
    %437 = vmatpush.msra.mxu0 0.0
    %438 = vmatpush.msra.mxu0 0.0
    %439 = vmatpush.msra.mxu0 0.0
    %440 = vmatpush.msra.mxu0 0.0
    %441 = vmatpush.msra.mxu0 0.0
    %442 = vmatpush.msra.mxu0 0.0
    %443 = vmatpush.msra.mxu0 0.0
    %444 = vmatpush.msra.mxu0 %v405
    %445 = vmatpush.msra.mxu0 %v384
    %446 = vmatpush.msra.mxu0 %v380
    %447 = vmatpush.msra.mxu0 %v376
    %448 = vmatpush.msra.mxu0 %v372
    %449 = vmatmul.f32.gmra.mxu0 %v398
    %v450 = vpop.f32.mrf.mxu0
    %v451 = vadd.f32 %v394, %v450
    %452 = vdwg.mxu0
    %453 = vmatpush.msra.mxu0 0.0
    %454 = vmatpush.msra.mxu0 0.0
    %455 = vmatpush.msra.mxu0 0.0
    %456 = vmatpush.msra.mxu0 0.0
    %457 = vmatpush.msra.mxu0 0.0
    %458 = vmatpush.msra.mxu0 0.0
    %459 = vmatpush.msra.mxu0 0.0
    %460 = vmatpush.msra.mxu0 0.0
    %461 = vmatpush.msra.mxu0 0.0
    %462 = vmatpush.msra.mxu0 0.0
    %463 = vmatpush.msra.mxu0 0.0
    %464 = vmatpush.msra.mxu0 %v408
    %465 = vmatpush.msra.mxu0 %v385
    %466 = vmatpush.msra.mxu0 %v381
    %467 = vmatpush.msra.mxu0 %v377
    %468 = vmatpush.msra.mxu0 %v373
    %469 = vmatmul.f32.gmra.mxu0 %v398
    %v470 = vpop.f32.mrf.mxu0
    %v471 = vadd.f32 %v394, %v470
    %472 = vdwg.mxu0
    %473 = vmatpush.msra.mxu0 0.0
    %474 = vmatpush.msra.mxu0 0.0
    %475 = vmatpush.msra.mxu0 0.0
    %476 = vmatpush.msra.mxu0 0.0
    %477 = vmatpush.msra.mxu0 0.0
    %478 = vmatpush.msra.mxu0 0.0
    %479 = vmatpush.msra.mxu0 0.0
    %480 = vmatpush.msra.mxu0 0.0
    %481 = vmatpush.msra.mxu0 0.0
    %482 = vmatpush.msra.mxu0 0.0
    %483 = vmatpush.msra.mxu0 0.0
    %484 = vmatpush.msra.mxu0 %v411
    %485 = vmatpush.msra.mxu0 %v386
    %486 = vmatpush.msra.mxu0 %v382
    %487 = vmatpush.msra.mxu0 %v378
    %488 = vmatpush.msra.mxu0 %v374
    %489 = vmatmul.f32.gmra.mxu0 %v398
    %v490 = vpop.f32.mrf.mxu0
    %v491 = vadd.f32 %v394, %v490
    %492 = vdwg.mxu0
    %v493 = vld [vmem:[%s3] sm:$0xf]
    %v494 = vld [vmem:[%s4] sm:$0xf]
    %v495 = vsel %vm400, %v431, 0.0
    %v496 = vsel %vm400, %v451, 0.0
    %v497 = vadd.f32 %v495, %v496
    %v498 = vsel %vm400, %v471, 0.0
    %v499 = vadd.f32 %v497, %v498
    %v500 = vsel %vm400, %v491, 0.0
    %v501 = vadd.f32 %v499, %v500
    %502 = vadd.xlane.f32.xlu0 %v501
    %v503 = vpop.xlane.xlu0 %502
    %v504 = vmul.f32 %v431, %v431
    %v505 = vmul.f32 %v451, %v451
    %v506 = vmul.f32 %v471, %v471
    %v507 = vmul.f32 %v491, %v491
    %v508 = vsel %vm400, %v504, 0.0
    %v509 = vsel %vm400, %v505, 0.0
    %v510 = vadd.f32 %v508, %v509
    %v511 = vsel %vm400, %v506, 0.0
    %v512 = vadd.f32 %v510, %v511
    %v513 = vsel %vm400, %v507, 0.0
    %v514 = vadd.f32 %v512, %v513
    %515 = vadd.xlane.f32.xlu0 %v514
    %v516 = vpop.xlane.xlu0 %515
    %v517 = vmul.f32 %v503, 0.001953125
    %v518 = vmul.f32 %v516, 0.001953125
    %v519 = vmul.f32 %v517, %v517
    %v520 = vsub.f32 %v518, %v519
    %v521 = vadd.f32 %v520, 1e-05
    %v522 = vrsqrt.pop %v521
    %v523 = vmul.f32 %v522, %v521
    %v524 = vmul.f32 %v523, %v522
    %v525 = vmul.f32 0.5, %v524
    %v526 = vsub.f32 1.5, %v525
    %v527 = vmul.f32 %v522, %v526
    %vm528 = vweird.f32 %v521
    %vm529 = vweird.f32 %v522
    %vm530 = vmor %vm528, %vm529
    %v531 = vsel %vm530, %v522, %v527
    %v532 = vmul.f32 %v493, %v531
    %v533 = vmul.f32 %v517, %v532
    %v534 = vsub.f32 %v494, %v533
    %536 = vset.pattern.permute.xlu0 0
    %537 = vperm.xlu0 %536, %v532
    %v538 = vpop.permute.xlu0 %537
    %v540 = vmul.f32 %v431, %v538
    %v541 = vmul.f32 %v451, %v538
    %v542 = vmul.f32 %v471, %v538
    %v543 = vmul.f32 %v491, %v538
    %545 = vset.pattern.permute.xlu0 0
    %546 = vperm.xlu0 %545, %v534
    %v547 = vpop.permute.xlu0 %546
    %v549 = vadd.f32 %v540, %v547
    %v550 = vadd.f32 %v541, %v547
    %v551 = vadd.f32 %v542, %v547
    %v552 = vadd.f32 %v543, %v547
    %v553 = vmax.f32 %v549, 0.0
    %v554 = vmax.f32 %v550, 0.0
    %v555 = vmax.f32 %v551, 0.0
    %v556 = vmax.f32 %v552, 0.0
    %v557 = vld [vmem:[%s5] sm:$0xf]
    %v558 = vld [vmem:[%s6] sm:$0xf]
    %559 = vst.msk [vmem:[#allocation2] sm:$0xf] %vm90, 0.0
    %564 = vrot.lane.b32.xlu0 %v553, 17
    %v565 = vpop.permute.xlu0 %564
    %566 = vrot.lane.b32.xlu0 %v554, 17
    %v567 = vpop.permute.xlu0 %566
    %568 = vrot.lane.b32.xlu0 %v555, 17
    %v569 = vpop.permute.xlu0 %568
    %570 = vrot.lane.b32.xlu0 %v556, 17
    %v571 = vpop.permute.xlu0 %570
    %v572 = vsel %vm109, %v565, %v567
    %v573 = vsel %vm109, %v567, %v569
    %v574 = vsel %vm109, %v569, %v571
    %579 = vst.msk [vmem:[#allocation2] sm:$0xf] %vm117, %v565
    %580 = vst [vmem:[#allocation2 + $0x8] sm:$0xf] %v572
    %581 = vst [vmem:[#allocation2 + $0x10] sm:$0xf] %v573
    %582 = vst [vmem:[#allocation2 + $0x18] sm:$0xf] %v574
    %583 = vst.msk [vmem:[#allocation2] sm:$0xf0] %vm122, 0.0
    %v584 = vrot.slane %v553, 4
    %v585 = vrot.slane %v554, 4
    %v586 = vrot.slane %v555, 4
    %v587 = vrot.slane %v556, 4
    %588 = vrot.lane.b32.xlu0 %v584, 16
    %v589 = vpop.permute.xlu0 %588
    %590 = vrot.lane.b32.xlu0 %v585, 16
    %v591 = vpop.permute.xlu0 %590
    %592 = vrot.lane.b32.xlu0 %v586, 16
    %v593 = vpop.permute.xlu0 %592
    %594 = vrot.lane.b32.xlu0 %v587, 16
    %v595 = vpop.permute.xlu0 %594
    %v596 = vsel %vm140, %v589, %v591
    %v597 = vsel %vm140, %v591, %v593
    %v598 = vsel %vm140, %v593, %v595
    %603 = vst.msk [vmem:[#allocation2] sm:$0xf0] %vm148, %v589
    %604 = vst [vmem:[#allocation2 + $0x8] sm:$0xf0] %v596
    %605 = vst [vmem:[#allocation2 + $0x10] sm:$0xf0] %v597
    %606 = vst [vmem:[#allocation2 + $0x18] sm:$0xf0] %v598
    %607 = vst.msk [vmem:[#allocation2 + $0x20] sm:$0xf] %vm153, 0.0
    %608 = vrot.lane.b32.xlu0 %v553, 15
    %v609 = vpop.permute.xlu0 %608
    %610 = vrot.lane.b32.xlu0 %v554, 15
    %v611 = vpop.permute.xlu0 %610
    %612 = vrot.lane.b32.xlu0 %v555, 15
    %v613 = vpop.permute.xlu0 %612
    %614 = vrot.lane.b32.xlu0 %v556, 15
    %v615 = vpop.permute.xlu0 %614
    %v616 = vsel %vm170, %v609, %v611
    %v617 = vsel %vm170, %v611, %v613
    %v618 = vsel %vm170, %v613, %v615
    %623 = vst.msk [vmem:[#allocation2 + $0x20] sm:$0xf] %vm178, %v609
    %624 = vst [vmem:[#allocation2 + $0x28] sm:$0xf] %v616
    %625 = vst [vmem:[#allocation2 + $0x30] sm:$0xf] %v617
    %626 = vst [vmem:[#allocation2 + $0x38] sm:$0xf] %v618
    %627 = vst.msk [vmem:[#allocation2 + $0x20] sm:$0xf0] %vm183, 0.0
    %628 = vrot.lane.b32.xlu0 %v584, 1
    %v629 = vpop.permute.xlu0 %628
    %630 = vrot.lane.b32.xlu0 %v585, 1
    %v631 = vpop.permute.xlu0 %630
    %632 = vrot.lane.b32.xlu0 %v586, 1
    %v633 = vpop.permute.xlu0 %632
    %634 = vrot.lane.b32.xlu0 %v587, 1
    %v635 = vpop.permute.xlu0 %634
    %v636 = vsel %vm201, %v629, %v631
    %v637 = vsel %vm201, %v631, %v633
    %v638 = vsel %vm201, %v633, %v635
    %643 = vst.msk [vmem:[#allocation2 + $0x20] sm:$0xf0] %vm209, %v629
    %644 = vst [vmem:[#allocation2 + $0x28] sm:$0xf0] %v636
    %645 = vst [vmem:[#allocation2 + $0x30] sm:$0xf0] %v637
    %646 = vst [vmem:[#allocation2 + $0x38] sm:$0xf0] %v638
    %647 = vst [vmem:[#allocation2 + $0x40] sm:$0xf] %v553
    %648 = vst [vmem:[#allocation2 + $0x48] sm:$0xf] %v554
    %649 = vst [vmem:[#allocation2 + $0x50] sm:$0xf] %v555
    %650 = vst [vmem:[#allocation2 + $0x58] sm:$0xf] %v556
    %651 = vrot.lane.b32.xlu0 %v584, 127
    %v652 = vpop.permute.xlu0 %651
    %653 = vrot.lane.b32.xlu0 %v585, 127
    %v654 = vpop.permute.xlu0 %653
    %655 = vrot.lane.b32.xlu0 %v586, 127
    %v656 = vpop.permute.xlu0 %655
    %657 = vrot.lane.b32.xlu0 %v587, 127
    %v658 = vpop.permute.xlu0 %657
    %v659 = vsel %vm245, %v652, %v654
    %v660 = vsel %vm245, %v654, %v656
    %v661 = vsel %vm245, %v656, %v658
    %666 = vst [vmem:[#allocation2 + $0x40] sm:$0xf0] %v659
    %667 = vst [vmem:[#allocation2 + $0x48] sm:$0xf0] %v660
    %668 = vst [vmem:[#allocation2 + $0x50] sm:$0xf0] %v661
    %669 = vst.msk [vmem:[#allocation2 + $0x58] sm:$0xf0] %vm256, %v658
    %670 = vst.msk [vmem:[#allocation2 + $0x58] sm:$0xf0] %vm258, 0.0
    %671 = vrot.lane.b32.xlu0 %v553, 113
    %v672 = vpop.permute.xlu0 %671
    %673 = vrot.lane.b32.xlu0 %v554, 113
    %v674 = vpop.permute.xlu0 %673
    %675 = vrot.lane.b32.xlu0 %v555, 113
    %v676 = vpop.permute.xlu0 %675
    %677 = vrot.lane.b32.xlu0 %v556, 113
    %v678 = vpop.permute.xlu0 %677
    %v679 = vsel %vm275, %v672, %v674
    %v680 = vsel %vm275, %v674, %v676
    %v681 = vsel %vm275, %v676, %v678
    %686 = vst [vmem:[#allocation2 + $0x60] sm:$0xf] %v679
    %687 = vst [vmem:[#allocation2 + $0x68] sm:$0xf] %v680
    %688 = vst [vmem:[#allocation2 + $0x70] sm:$0xf] %v681
    %689 = vst.msk [vmem:[#allocation2 + $0x78] sm:$0xf] %vm286, %v678
    %690 = vst.msk [vmem:[#allocation2 + $0x78] sm:$0xf] %vm288, 0.0
    %691 = vrot.lane.b32.xlu0 %v584, 112
    %v692 = vpop.permute.xlu0 %691
    %693 = vrot.lane.b32.xlu0 %v585, 112
    %v694 = vpop.permute.xlu0 %693
    %695 = vrot.lane.b32.xlu0 %v586, 112
    %v696 = vpop.permute.xlu0 %695
    %697 = vrot.lane.b32.xlu0 %v587, 112
    %v698 = vpop.permute.xlu0 %697
    %v699 = vsel %vm306, %v692, %v694
    %v700 = vsel %vm306, %v694, %v696
    %v701 = vsel %vm306, %v696, %v698
    %706 = vst [vmem:[#allocation2 + $0x60] sm:$0xf0] %v699
    %707 = vst [vmem:[#allocation2 + $0x68] sm:$0xf0] %v700
    %708 = vst [vmem:[#allocation2 + $0x70] sm:$0xf0] %v701
    %709 = vst.msk [vmem:[#allocation2 + $0x78] sm:$0xf0] %vm317, %v698
    %710 = vst.msk [vmem:[#allocation2 + $0x78] sm:$0xf0] %vm319, 0.0
    %711 = vrot.lane.b32.xlu0 %v553, 111
    %v712 = vpop.permute.xlu0 %711
    %713 = vrot.lane.b32.xlu0 %v554, 111
    %v714 = vpop.permute.xlu0 %713
    %715 = vrot.lane.b32.xlu0 %v555, 111
    %v716 = vpop.permute.xlu0 %715
    %717 = vrot.lane.b32.xlu0 %v556, 111
    %v718 = vpop.permute.xlu0 %717
    %v719 = vsel %vm336, %v712, %v714
    %v720 = vsel %vm336, %v714, %v716
    %v721 = vsel %vm336, %v716, %v718
    %726 = vst [vmem:[#allocation2 + $0x80] sm:$0xf] %v719
    %727 = vst [vmem:[#allocation2 + $0x88] sm:$0xf] %v720
    %728 = vst [vmem:[#allocation2 + $0x90] sm:$0xf] %v721
    %729 = vst.msk [vmem:[#allocation2 + $0x98] sm:$0xf] %vm347, %v718
    %730 = vst.msk [vmem:[#allocation2 + $0x98] sm:$0xf] %vm349, 0.0
    %v731 = vld [vmem:[#allocation2] sm:$0xff]
    %v732 = vld [vmem:[#allocation2 + $0x8] sm:$0xff]
    %v733 = vld [vmem:[#allocation2 + $0x10] sm:$0xff]
    %v734 = vld [vmem:[#allocation2 + $0x18] sm:$0xff]
    %v735 = vld [vmem:[#allocation2 + $0x20] sm:$0xff]
    %v736 = vld [vmem:[#allocation2 + $0x28] sm:$0xff]
    %v737 = vld [vmem:[#allocation2 + $0x30] sm:$0xff]
    %v738 = vld [vmem:[#allocation2 + $0x38] sm:$0xff]
    %v739 = vld [vmem:[#allocation2 + $0x40] sm:$0xff]
    %v740 = vld [vmem:[#allocation2 + $0x48] sm:$0xff]
    %v741 = vld [vmem:[#allocation2 + $0x50] sm:$0xff]
    %v742 = vld [vmem:[#allocation2 + $0x58] sm:$0xff]
    %v743 = vld [vmem:[#allocation2 + $0x60] sm:$0xff]
    %v744 = vld [vmem:[#allocation2 + $0x68] sm:$0xff]
    %v745 = vld [vmem:[#allocation2 + $0x70] sm:$0xff]
    %v746 = vld [vmem:[#allocation2 + $0x78] sm:$0xff]
    %v747 = vld [vmem:[#allocation2 + $0x80] sm:$0xf]
    %v748 = vld [vmem:[#allocation2 + $0x88] sm:$0xf]
    %v749 = vld [vmem:[#allocation2 + $0x90] sm:$0xf]
    %v750 = vld [vmem:[#allocation2 + $0x98] sm:$0xf]
    %v751 = vmul.f32 %v731, %v66
    %v752 = vmul.f32 %v732, %v67
    %v753 = vmul.f32 %v733, %v68
    %v754 = vmul.f32 %v734, %v69
    %v755 = vmul.f32 %v735, %v70
    %v756 = vmul.f32 %v736, %v71
    %v757 = vmul.f32 %v737, %v72
    %v758 = vmul.f32 %v738, %v73
    %v759 = vmul.f32 %v739, %v74
    %v760 = vmul.f32 %v740, %v75
    %v761 = vmul.f32 %v741, %v76
    %v762 = vmul.f32 %v742, %v77
    %v763 = vmul.f32 %v743, %v78
    %v764 = vmul.f32 %v744, %v79
    %v765 = vmul.f32 %v745, %v80
    %v766 = vmul.f32 %v746, %v81
    %v767 = vmul.f32 %v747, %v82
    %v768 = vmul.f32 %v748, %v83
    %v769 = vmul.f32 %v749, %v84
    %v770 = vmul.f32 %v750, %v85
    %772 = vset.pattern.permute.xlu0 0
    %773 = vperm.xlu0 %772, %v558
    %v774 = vpop.permute.xlu0 %773
    %v777 = vsel %vm396, %v557, 0
    %v780 = vsel %vm400, %v767, 0
    %v783 = vsel %vm400, %v768, 0
    %v786 = vsel %vm400, %v769, 0
    %v789 = vsel %vm400, %v770, 0
    %791 = vmatpush.msra.mxu0 0.0
    %792 = vmatpush.msra.mxu0 0.0
    %793 = vmatpush.msra.mxu0 0.0
    %794 = vmatpush.msra.mxu0 0.0
    %795 = vmatpush.msra.mxu0 0.0
    %796 = vmatpush.msra.mxu0 0.0
    %797 = vmatpush.msra.mxu0 0.0
    %798 = vmatpush.msra.mxu0 0.0
    %799 = vmatpush.msra.mxu0 0.0
    %800 = vmatpush.msra.mxu0 0.0
    %801 = vmatpush.msra.mxu0 0.0
    %802 = vmatpush.msra.mxu0 %v780
    %803 = vmatpush.msra.mxu0 %v763
    %804 = vmatpush.msra.mxu0 %v759
    %805 = vmatpush.msra.mxu0 %v755
    %806 = vmatpush.msra.mxu0 %v751
    %807 = vmatmul.f32.gmra.mxu0 %v777
    %v808 = vpop.f32.mrf.mxu0
    %v809 = vadd.f32 %v774, %v808
    %810 = vdwg.mxu0
    %811 = vmatpush.msra.mxu0 0.0
    %812 = vmatpush.msra.mxu0 0.0
    %813 = vmatpush.msra.mxu0 0.0
    %814 = vmatpush.msra.mxu0 0.0
    %815 = vmatpush.msra.mxu0 0.0
    %816 = vmatpush.msra.mxu0 0.0
    %817 = vmatpush.msra.mxu0 0.0
    %818 = vmatpush.msra.mxu0 0.0
    %819 = vmatpush.msra.mxu0 0.0
    %820 = vmatpush.msra.mxu0 0.0
    %821 = vmatpush.msra.mxu0 0.0
    %822 = vmatpush.msra.mxu0 %v783
    %823 = vmatpush.msra.mxu0 %v764
    %824 = vmatpush.msra.mxu0 %v760
    %825 = vmatpush.msra.mxu0 %v756
    %826 = vmatpush.msra.mxu0 %v752
    %827 = vmatmul.f32.gmra.mxu0 %v777
    %v828 = vpop.f32.mrf.mxu0
    %v829 = vadd.f32 %v774, %v828
    %830 = vdwg.mxu0
    %831 = vmatpush.msra.mxu0 0.0
    %832 = vmatpush.msra.mxu0 0.0
    %833 = vmatpush.msra.mxu0 0.0
    %834 = vmatpush.msra.mxu0 0.0
    %835 = vmatpush.msra.mxu0 0.0
    %836 = vmatpush.msra.mxu0 0.0
    %837 = vmatpush.msra.mxu0 0.0
    %838 = vmatpush.msra.mxu0 0.0
    %839 = vmatpush.msra.mxu0 0.0
    %840 = vmatpush.msra.mxu0 0.0
    %841 = vmatpush.msra.mxu0 0.0
    %842 = vmatpush.msra.mxu0 %v786
    %843 = vmatpush.msra.mxu0 %v765
    %844 = vmatpush.msra.mxu0 %v761
    %845 = vmatpush.msra.mxu0 %v757
    %846 = vmatpush.msra.mxu0 %v753
    %847 = vmatmul.f32.gmra.mxu0 %v777
    %v848 = vpop.f32.mrf.mxu0
    %v849 = vadd.f32 %v774, %v848
    %850 = vdwg.mxu0
    %851 = vmatpush.msra.mxu0 0.0
    %852 = vmatpush.msra.mxu0 0.0
    %853 = vmatpush.msra.mxu0 0.0
    %854 = vmatpush.msra.mxu0 0.0
    %855 = vmatpush.msra.mxu0 0.0
    %856 = vmatpush.msra.mxu0 0.0
    %857 = vmatpush.msra.mxu0 0.0
    %858 = vmatpush.msra.mxu0 0.0
    %859 = vmatpush.msra.mxu0 0.0
    %860 = vmatpush.msra.mxu0 0.0
    %861 = vmatpush.msra.mxu0 0.0
    %862 = vmatpush.msra.mxu0 %v789
    %863 = vmatpush.msra.mxu0 %v766
    %864 = vmatpush.msra.mxu0 %v762
    %865 = vmatpush.msra.mxu0 %v758
    %866 = vmatpush.msra.mxu0 %v754
    %867 = vmatmul.f32.gmra.mxu0 %v777
    %v868 = vpop.f32.mrf.mxu0
    %v869 = vadd.f32 %v774, %v868
    %870 = vdwg.mxu0
    %v871 = vld [vmem:[%s7] sm:$0xf]
    %v872 = vld [vmem:[%s8] sm:$0xf]
    %v873 = vsel %vm400, %v809, 0.0
    %v874 = vsel %vm400, %v829, 0.0
    %v875 = vadd.f32 %v873, %v874
    %v876 = vsel %vm400, %v849, 0.0
    %v877 = vadd.f32 %v875, %v876
    %v878 = vsel %vm400, %v869, 0.0
    %v879 = vadd.f32 %v877, %v878
    %880 = vadd.xlane.f32.xlu0 %v879
    %v881 = vpop.xlane.xlu0 %880
    %v882 = vmul.f32 %v809, %v809
    %v883 = vmul.f32 %v829, %v829
    %v884 = vmul.f32 %v849, %v849
    %v885 = vmul.f32 %v869, %v869
    %v886 = vsel %vm400, %v882, 0.0
    %v887 = vsel %vm400, %v883, 0.0
    %v888 = vadd.f32 %v886, %v887
    %v889 = vsel %vm400, %v884, 0.0
    %v890 = vadd.f32 %v888, %v889
    %v891 = vsel %vm400, %v885, 0.0
    %v892 = vadd.f32 %v890, %v891
    %893 = vadd.xlane.f32.xlu0 %v892
    %v894 = vpop.xlane.xlu0 %893
    %v895 = vmul.f32 %v881, 0.001953125
    %v896 = vmul.f32 %v894, 0.001953125
    %v897 = vmul.f32 %v895, %v895
    %v898 = vsub.f32 %v896, %v897
    %v899 = vadd.f32 %v898, 1e-05
    %v900 = vrsqrt.pop %v899
    %v901 = vmul.f32 %v900, %v899
    %v902 = vmul.f32 %v901, %v900
    %v903 = vmul.f32 0.5, %v902
    %v904 = vsub.f32 1.5, %v903
    %v905 = vmul.f32 %v900, %v904
    %vm906 = vweird.f32 %v899
    %vm907 = vweird.f32 %v900
    %vm908 = vmor %vm906, %vm907
    %v909 = vsel %vm908, %v900, %v905
    %v910 = vmul.f32 %v871, %v909
    %v911 = vmul.f32 %v895, %v910
    %v912 = vsub.f32 %v872, %v911
    %914 = vset.pattern.permute.xlu0 0
    %915 = vperm.xlu0 %914, %v910
    %v916 = vpop.permute.xlu0 %915
    %v918 = vmul.f32 %v809, %v916
    %v919 = vmul.f32 %v829, %v916
    %v920 = vmul.f32 %v849, %v916
    %v921 = vmul.f32 %v869, %v916
    %923 = vset.pattern.permute.xlu0 0
    %924 = vperm.xlu0 %923, %v912
    %v925 = vpop.permute.xlu0 %924
    %v927 = vadd.f32 %v918, %v925
    %v928 = vadd.f32 %v919, %v925
    %v929 = vadd.f32 %v920, %v925
    %v930 = vadd.f32 %v921, %v925
    %931 = vst [vmem:[#allocation1] ss:$2 sm:$0xff] %v86
    %s932 = scalar_lea.vmem [#allocation1], 16
    %933 = vst [vmem:[%s932] ss:$2 sm:$0xff] %v87
    %v934 = vld.sshfl [vmem:[#allocation1] sm:$0xff pattern:$0x75316420]
    %v935 = vld.sshfl [vmem:[#allocation1 + $0x8] sm:$0xff pattern:$0x75316420]
    %v936 = vld.sshfl [vmem:[#allocation1 + $0x10] sm:$0xff pattern:$0x75316420]
    %v937 = vld.sshfl [vmem:[#allocation1 + $0x18] sm:$0xff pattern:$0x75316420]
    %v942 = vadd.f32 %v927, %v934
    %v943 = vadd.f32 %v928, %v935
    %v944 = vadd.f32 %v929, %v936
    %v945 = vadd.f32 %v930, %v937
    %v946 = vmax.f32 %v942, 0.0
    %v947 = vmax.f32 %v943, 0.0
    %v948 = vmax.f32 %v944, 0.0
    %v949 = vmax.f32 %v945, 0.0
    %v954 = vrot.slane %v947, 4
    %v955 = vrot.slane %v949, 4
    %v956 = vsel %vm400, %v946, %v954
    %v957 = vsel %vm400, %v948, %v955
    %960 = vst [vmem:[#allocation8] sm:$0xff] %v956
    %961 = vst [vmem:[#allocation8 + $0x8] sm:$0xff] %v957
    // Predicated region
    $region50: #{tpu_custom_call.1} parent=1 // pred_check
      _
    $region51: #{tpu_custom_call.1} parent=1 // pred_check_branch
      %963 = sbr.rel (0) target = $region53
    $region52: #{tpu_custom_call.1} parent=1 // pred_region
      %965 = vsyncadd [#allocation5], 0
      %s967 = sshll.u32 [#allocation8], 4
      %s968 = int_to_ptr.vmem [resolvable:$true] %s967
      %s969 = sshll.u32 %s10, 4
      %s970 = int_to_ptr.hbm [resolvable:$true] %s969
      %972 = dma.vmem_to_hbm [thread:$0]  %s968, 256, %s970, [#allocation5]
    $region53: #{tpu_custom_call.1} parent=1 // pred_fallthru
      _
    // Predicated region
    $region54: #{tpu_custom_call.1} parent=1 // pred_check
      _
    $region55: #{tpu_custom_call.1} parent=1 // pred_check_branch
      %974 = sbr.rel (0) target = $region57
    $region56: #{tpu_custom_call.1} parent=1 // pred_region
      %976 = dma.done [#allocation5], 256
    $region57: #{tpu_custom_call.1} parent=1 // pred_fallthru
      _
    %977 = vsyncpa [#allocation4], 1
    %978 = vsyncpa [#allocation7], 1
    %979 = vsyncpa [#allocation5], 1

</llo_original>
